<compile_context>
chip_gen: v7x
topology: tpu7x:2x2x1
jax: 0.10.0
libtpu: 0.0.40
codegen_flags: <defaults>
</compile_context>

<pallas_src>
import jax
import jax.numpy as jnp
from jax.experimental import pallas as pl
from jax.experimental.pallas import tpu as pltpu


OUT_PAD = 128   # lane-dense output width (4 real outputs + zero padding)
LANE = 128      # hidden width is padded to a multiple of this


def _round_up(x, m):
    return ((x + m - 1) // m) * m


def _controller_kernel(xa_ref, xb_ref, w_in_ref, w_h_ref, w_out_ref, b_ref,
                       out_ref, xc_ref):
    R = xa_ref.shape[1]
    Cp = w_in_ref.shape[1]
    Op = out_ref.shape[1]

    # Pack x_a | x_b into one (tile, 2R) VMEM slab -> single K=2R MXU pass
    # (replaces two K=R matmuls + a VPU add; no wrapper-side concat needed).
    xc_ref[:, :R] = xa_ref[...]
    xc_ref[:, R:] = xb_ref[...]

    # Layer 1: x @ W_in + b_in, tanh.                     (tile, Cp)
    h = jnp.tanh(
        jnp.dot(xc_ref[...], w_in_ref[...], preferred_element_type=jnp.float32)
        + b_ref[0:1, :Cp])
    # Layer 2: h @ W_h + b_h, tanh.                       (tile, Cp)
    h = jnp.tanh(
        jnp.dot(h, w_h_ref[...], preferred_element_type=jnp.float32)
        + b_ref[1:2, :Cp])
    # Layer 3: h @ W_out + b_out, tanh; unmasked full-lane store. (tile, 128)
    out_ref[...] = jnp.tanh(
        jnp.dot(h, w_out_ref[...], preferred_element_type=jnp.float32)
        + b_ref[2:3, :Op])


def integrated_controller_forward(x_a, x_b, params, *, max_block_rows=4096):
    """JAX/Pallas equivalent of IntegratedController.forward.

    x_a, x_b: (B, reservoir_units) float32
    params:   dict from init_params (padded (in, out)-layout weights)
    Returns a tuple of four (B,) arrays, matching the PyTorch module.
    """
    B, R = x_a.shape
    w_in_p, w_h_p = params["w_in_p"], params["w_h_p"]
    w_out_p, b_all = params["w_out_p"], params["b_all"]

    # Tile selection: one tile for the whole (8-aligned) batch whenever it
    # fits under the cap; cap is clamped to a multiple of 8.
    cap = max(8, (max_block_rows // 8) * 8)
    rows8 = pl.cdiv(B, 8) * 8
    tile = rows8 if rows8 <= cap else cap
    Bp = pl.cdiv(B, tile) * tile
    if Bp != B:
        x_a = jnp.pad(x_a, ((0, Bp - B), (0, 0)))
        x_b = jnp.pad(x_b, ((0, Bp - B), (0, 0)))

    num_tiles = Bp // tile
    # Only shard across v7x's two TensorCores when each core gets real work;
    # otherwise keep a single sequential (single-core) pass.
    dims = ("parallel",) if (num_tiles >= 2 and tile >= 2048) else ("arbitrary",)

    x_spec = pl.BlockSpec((tile, R), lambda i: (i, 0))           # streamed per tile
    resident = lambda a: pl.BlockSpec(a.shape, lambda i: (0, 0))  # VMEM-resident

    out = pl.pallas_call(
        _controller_kernel,
        out_shape=jax.ShapeDtypeStruct((Bp, OUT_PAD), jnp.float32),
        grid=(num_tiles,),
        in_specs=[
            x_spec,
            x_spec,
            resident(w_in_p),
            resident(w_h_p),
            resident(w_out_p),
            resident(b_all),
        ],
        out_specs=pl.BlockSpec((tile, OUT_PAD), lambda i: (i, 0)),
        scratch_shapes=[pltpu.VMEM((tile, 2 * R), jnp.float32)],
        compiler_params=pltpu.CompilerParams(dimension_semantics=dims),
    )(x_a, x_b, w_in_p, w_h_p, w_out_p, b_all)

    out4 = out[:B, :4]   # single slice of the real rows/columns
    return out4[:, 0], out4[:, 1], out4[:, 2], out4[:, 3]


def init_params(key, reservoir_units, controller_units, out_pad=OUT_PAD):
    """Deterministic init mimicking nn.Linear's uniform fan-in init.

    Stores kernel weights as (in, out), with the hidden width zero-padded to
    a multiple of 128 lanes and the output width padded to `out_pad`.
    Padded rows/columns are exactly zero, so the real outputs are unchanged.
    """
    input_size = reservoir_units * 2
    Cp = _round_up(controller_units, LANE)
    BW = max(Cp, out_pad)
    ks = jax.random.split(key, 6)

    def linear(kw, kb, fan_in, fan_out):
        bound = 1.0 / (fan_in ** 0.5)
        w = jax.random.uniform(kw, (fan_in, fan_out), jnp.float32, -bound, bound)
        b = jax.random.uniform(kb, (1, fan_out), jnp.float32, -bound, bound)
        return w, b

    w_in, b_in = linear(ks[0], ks[1], input_size, controller_units)
    w_h, b_h = linear(ks[2], ks[3], controller_units, controller_units)
    w_out, b_out = linear(ks[4], ks[5], controller_units, 4)

    # Lane-padded kernel operands.
    w_in_p = jnp.zeros((input_size, Cp), jnp.float32).at[:, :controller_units].set(w_in)
    w_h_p = (jnp.zeros((Cp, Cp), jnp.float32)
             .at[:controller_units, :controller_units].set(w_h))
    w_out_p = (jnp.zeros((Cp, out_pad), jnp.float32)
               .at[:controller_units, :4].set(w_out))
    # All three biases folded into one (8, BW) resident operand.
    b_all = jnp.zeros((8, BW), jnp.float32)
    b_all = b_all.at[0, :controller_units].set(b_in[0])
    b_all = b_all.at[1, :controller_units].set(b_h[0])
    b_all = b_all.at[2, :4].set(b_out[0])

    return {
        # kernel parameters (padded)
        "w_in_p": w_in_p, "w_h_p": w_h_p, "w_out_p": w_out_p, "b_all": b_all,
        # unpadded originals (reference / interop with the PyTorch layout)
        "w_in": w_in, "b_in": b_in, "w_h": w_h, "b_h": b_h,
        "w_out": w_out, "b_out": b_out,
    }


def _reference_forward(x_a, x_b, p):
    x = jnp.concatenate([x_a, x_b], axis=-1)
    h = jnp.tanh(x @ p["w_in"] + p["b_in"])
    h = jnp.tanh(h @ p["w_h"] + p["b_h"])
    o = jnp.tanh(h @ p["w_out"] + p["b_out"])
    return o[..., 0], o[..., 1], o[..., 2], o[..., 3]


if __name__ == "__main__":
    reservoir_units = 32
    controller_units = 32
    batch = 8

    key = jax.random.PRNGKey(0)
    k_a, k_b, k_p = jax.random.split(key, 3)
    x_a = jax.random.normal(k_a, (batch, reservoir_units), jnp.float32)
    x_b = jax.random.normal(k_b, (batch, reservoir_units), jnp.float32)
    params = init_params(k_p, reservoir_units, controller_units)

    outs = jax.block_until_ready(integrated_controller_forward(x_a, x_b, params))

    # sanity check against plain-JAX reference
    refs = _reference_forward(x_a, x_b, params)
    for o, r in zip(outs, refs):
        assert o.shape == (batch,)
        assert jnp.allclose(o, r, atol=1e-5), (o, r)

    # exercise a batch that is not 8-aligned (row-padding, still 1 grid tile)
    xb_a = jax.random.normal(k_a, (300, reservoir_units), jnp.float32)
    xb_b = jax.random.normal(k_b, (300, reservoir_units), jnp.float32)
    big = jax.block_until_ready(integrated_controller_forward(xb_a, xb_b, params))
    big_ref = _reference_forward(xb_a, xb_b, params)
    for o, r in zip(big, big_ref):
        assert o.shape == (300,)
        assert jnp.allclose(o, r, atol=1e-5)

    # exercise the multi-tile path (grid > 1) with a small forced cap
    xm_a = jax.random.normal(k_a, (1056, reservoir_units), jnp.float32)
    xm_b = jax.random.normal(k_b, (1056, reservoir_units), jnp.float32)
    multi = jax.block_until_ready(
        integrated_controller_forward(xm_a, xm_b, params, max_block_rows=512))
    multi_ref = _reference_forward(xm_a, xm_b, params)
    for o, r in zip(multi, multi_ref):
        assert o.shape == (1056,)
        assert jnp.allclose(o, r, atol=1e-5)

    print("KERNEL_OK")
</pallas_src>

<mosaic_0001>
module attributes {stable_mosaic.version = 11 : i64} {
  func.func @_controller_kernel(%arg0: i32, %arg1: memref<8x32xf32, #tpu.memory_space<vmem>>, %arg2: memref<8x32xf32, #tpu.memory_space<vmem>>, %arg3: memref<64x128xf32, #tpu.memory_space<vmem>>, %arg4: memref<128x128xf32, #tpu.memory_space<vmem>>, %arg5: memref<128x128xf32, #tpu.memory_space<vmem>>, %arg6: memref<8x128xf32, #tpu.memory_space<vmem>>, %arg7: memref<8x128xf32, #tpu.memory_space<vmem>>, %arg8: memref<8x64xf32, #tpu.memory_space<vmem>>) attributes {dimension_semantics = [#tpu.dimension_semantics<arbitrary>], iteration_bounds = array<i64: 1>, scalar_prefetch = 0 : i64, scratch_operands = 1 : i64, tpu.core_type = #tpu.core_type<tc>, window_params = [{transform_indices = @transform_0, window_bounds = array<i64: 8, 32>}, {transform_indices = @transform_1, window_bounds = array<i64: 8, 32>}, {pipeline_mode = #tpu.pipeline_mode<synchronous>, transform_indices = @transform_2, window_bounds = array<i64: 64, 128>}, {pipeline_mode = #tpu.pipeline_mode<synchronous>, transform_indices = @transform_3, window_bounds = array<i64: 128, 128>}, {pipeline_mode = #tpu.pipeline_mode<synchronous>, transform_indices = @transform_4, window_bounds = array<i64: 128, 128>}, {pipeline_mode = #tpu.pipeline_mode<synchronous>, transform_indices = @transform_5, window_bounds = array<i64: 8, 128>}, {transform_indices = @transform_6, window_bounds = array<i64: 8, 128>}]} {
    %c0 = arith.constant 0 : index
    %c0_0 = arith.constant 0 : index
    %0 = vector.load %arg1[%c0, %c0_0] : memref<8x32xf32, #tpu.memory_space<vmem>>, vector<8x32xf32>
    %c0_1 = arith.constant 0 : index
    %c0_2 = arith.constant 0 : index
    %1 = vector.load %arg8[%c0_1, %c0_2] : memref<8x64xf32, #tpu.memory_space<vmem>>, vector<8x32xf32>
    tpu.vector_store %arg8[%c0_1, %c0_2], %0 {strides = array<i32>} : memref<8x64xf32, #tpu.memory_space<vmem>>, vector<8x32xf32>,
    %c0_3 = arith.constant 0 : index
    %c0_4 = arith.constant 0 : index
    %2 = vector.load %arg2[%c0_3, %c0_4] : memref<8x32xf32, #tpu.memory_space<vmem>>, vector<8x32xf32>
    %c0_5 = arith.constant 0 : index
    %c32 = arith.constant 32 : index
    %3 = vector.load %arg8[%c0_5, %c32] : memref<8x64xf32, #tpu.memory_space<vmem>>, vector<8x32xf32>
    tpu.vector_store %arg8[%c0_5, %c32], %2 {strides = array<i32>} : memref<8x64xf32, #tpu.memory_space<vmem>>, vector<8x32xf32>,
    %c0_6 = arith.constant 0 : index
    %c0_7 = arith.constant 0 : index
    %4 = vector.load %arg8[%c0_6, %c0_7] : memref<8x64xf32, #tpu.memory_space<vmem>>, vector<8x64xf32>
    %c0_8 = arith.constant 0 : index
    %c0_9 = arith.constant 0 : index
    %5 = vector.load %arg3[%c0_8, %c0_9] : memref<64x128xf32, #tpu.memory_space<vmem>>, vector<64x128xf32>
    %cst = arith.constant dense<0.000000e+00> : vector<8x128xf32>
    %6 = tpu.matmul %4, %5, %cst {dimension_numbers = #tpu.dot_dimension_numbers<[1], [0], [0], [1], [0, 0, 1, 1], [], []>} : vector<8x64xf32>, vector<64x128xf32>, vector<8x128xf32> -> vector<8x128xf32>
    %c0_10 = arith.constant 0 : index
    %c0_11 = arith.constant 0 : index
    %7 = vector.load %arg6[%c0_10, %c0_11] : memref<8x128xf32, #tpu.memory_space<vmem>>, vector<1x128xf32>
    %8 = vector.broadcast %7 : vector<1x128xf32> to vector<8x128xf32>
    %9 = arith.addf %6, %8 : vector<8x128xf32>
    %10 = math.tanh %9 : vector<8x128xf32>
    %c0_12 = arith.constant 0 : index
    %c0_13 = arith.constant 0 : index
    %11 = vector.load %arg4[%c0_12, %c0_13] : memref<128x128xf32, #tpu.memory_space<vmem>>, vector<128x128xf32>
    %cst_14 = arith.constant dense<0.000000e+00> : vector<8x128xf32>
    %12 = tpu.matmul %10, %11, %cst_14 {dimension_numbers = #tpu.dot_dimension_numbers<[1], [0], [0], [1], [0, 0, 1, 1], [], []>} : vector<8x128xf32>, vector<128x128xf32>, vector<8x128xf32> -> vector<8x128xf32>
    %c1 = arith.constant 1 : index
    %c0_15 = arith.constant 0 : index
    %13 = vector.load %arg6[%c1, %c0_15] : memref<8x128xf32, #tpu.memory_space<vmem>>, vector<1x128xf32>
    %14 = vector.broadcast %13 : vector<1x128xf32> to vector<8x128xf32>
    %15 = arith.addf %12, %14 : vector<8x128xf32>
    %16 = math.tanh %15 : vector<8x128xf32>
    %c0_16 = arith.constant 0 : index
    %c0_17 = arith.constant 0 : index
    %17 = vector.load %arg5[%c0_16, %c0_17] : memref<128x128xf32, #tpu.memory_space<vmem>>, vector<128x128xf32>
    %cst_18 = arith.constant dense<0.000000e+00> : vector<8x128xf32>
    %18 = tpu.matmul %16, %17, %cst_18 {dimension_numbers = #tpu.dot_dimension_numbers<[1], [0], [0], [1], [0, 0, 1, 1], [], []>} : vector<8x128xf32>, vector<128x128xf32>, vector<8x128xf32> -> vector<8x128xf32>
    %c2 = arith.constant 2 : index
    %c0_19 = arith.constant 0 : index
    %19 = vector.load %arg6[%c2, %c0_19] : memref<8x128xf32, #tpu.memory_space<vmem>>, vector<1x128xf32>
    %20 = vector.broadcast %19 : vector<1x128xf32> to vector<8x128xf32>
    %21 = arith.addf %18, %20 : vector<8x128xf32>
    %22 = math.tanh %21 : vector<8x128xf32>
    %c0_20 = arith.constant 0 : index
    %c0_21 = arith.constant 0 : index
    %23 = vector.load %arg7[%c0_20, %c0_21] : memref<8x128xf32, #tpu.memory_space<vmem>>, vector<8x128xf32>
    tpu.vector_store %arg7[%c0_20, %c0_21], %22 {strides = array<i32>} : memref<8x128xf32, #tpu.memory_space<vmem>>, vector<8x128xf32>,
    return
  }
  func.func @transform_0(%arg0: i32) -> (i32, i32) {
    %c0_i32 = arith.constant 0 : i32
    %c0_i32_0 = arith.constant 0 : i32
    return %arg0, %c0_i32 : i32, i32
  }
  func.func @transform_1(%arg0: i32) -> (i32, i32) {
    %c0_i32 = arith.constant 0 : i32
    %c0_i32_0 = arith.constant 0 : i32
    return %arg0, %c0_i32 : i32, i32
  }
  func.func @transform_2(%arg0: i32) -> (i32, i32) {
    %c0_i32 = arith.constant 0 : i32
    %c0_i32_0 = arith.constant 0 : i32
    %c0_i32_1 = arith.constant 0 : i32
    return %c0_i32, %c0_i32_0 : i32, i32
  }
  func.func @transform_3(%arg0: i32) -> (i32, i32) {
    %c0_i32 = arith.constant 0 : i32
    %c0_i32_0 = arith.constant 0 : i32
    %c0_i32_1 = arith.constant 0 : i32
    return %c0_i32, %c0_i32_0 : i32, i32
  }
  func.func @transform_4(%arg0: i32) -> (i32, i32) {
    %c0_i32 = arith.constant 0 : i32
    %c0_i32_0 = arith.constant 0 : i32
    %c0_i32_1 = arith.constant 0 : i32
    return %c0_i32, %c0_i32_0 : i32, i32
  }
  func.func @transform_5(%arg0: i32) -> (i32, i32) {
    %c0_i32 = arith.constant 0 : i32
    %c0_i32_0 = arith.constant 0 : i32
    %c0_i32_1 = arith.constant 0 : i32
    return %c0_i32, %c0_i32_0 : i32, i32
  }
  func.func @transform_6(%arg0: i32) -> (i32, i32) {
    %c0_i32 = arith.constant 0 : i32
    %c0_i32_0 = arith.constant 0 : i32
    return %arg0, %c0_i32 : i32, i32
  }
}

</mosaic_0001>

<llo_original>
// kernel: tpu_custom_call.1
$region0: #{tpu_custom_call.1}
  #allocation0 [shape = 'u32[]', space=smem, size = 0x4, offset = 0x4, fixed_abs, tag = 'smem constant byte address 0x4 - core index']
  #allocation1 [shape = 'u32[144,128]{1,0:T(1,128)}', space=vmem, size = 0x12000, scoped, tag = 'internal scratch']
  #allocation2 [shape = 'f32[8,64]{1,0:T(8,128)}', space=vmem, size = 0x1000, scoped, tag = 'scratch operand']
  %s0 = inlined_call_operand.hbm [shape: f32[8,32], index: 0, kind: input, shape index: {}]
  %s1 = inlined_call_operand.hbm [shape: f32[8,32], index: 1, kind: input, shape index: {}]
  %s2 = inlined_call_operand.hbm [shape: f32[64,128], index: 2, kind: input, shape index: {}]
  %s3 = inlined_call_operand.hbm [shape: f32[128,128], index: 3, kind: input, shape index: {}]
  %s4 = inlined_call_operand.hbm [shape: f32[128,128], index: 4, kind: input, shape index: {}]
  %s5 = inlined_call_operand.vmem [shape: f32[8,128], index: 5, kind: input, shape index: {}]
  %s6 = inlined_call_operand.hbm [shape: f32[8,128], index: 6, kind: output, shape index: {}]
  %s7 = sld [smem:[#allocation0]]
  $region54: #{tpu_custom_call.1} parent=0
    _
  %s9 = ssub.s32 1, %s7
  %s10 = scalar_select 0, %s9, %s7
  $region1: #{tpu_custom_call.1} parent=0
    #allocation3 [shape = 'u8[4096]{0}', space=vmem, size = 0x1000, scoped, tag = 'input window, operand 0, single buffered']
    #allocation4 [shape = 's32[1]{0}', space=sflag, size = 0x4, scoped, tag = 'scoped memory for tpu_custom_call.1']
    #allocation5 [shape = 's32[1]{0}', space=sflag, size = 0x4, scoped, tag = 'scoped memory for tpu_custom_call.1']
    #allocation6 [shape = 'u8[4096]{0}', space=vmem, size = 0x1000, scoped, tag = 'input window, operand 1, single buffered']
    #allocation7 [shape = 's32[1]{0}', space=sflag, size = 0x4, scoped, tag = 'scoped memory for tpu_custom_call.1']
    #allocation8 [shape = 'u8[32768]{0}', space=vmem, size = 0x8000, scoped, tag = 'input window, operand 2, single buffered']
    #allocation9 [shape = 'u8[65536]{0}', space=vmem, size = 0x10000, scoped, tag = 'input window, operand 3, single buffered']
    #allocation10 [shape = 's32[1]{0}', space=sflag, size = 0x4, scoped, tag = 'scoped memory for tpu_custom_call.1']
    #allocation11 [shape = 'u8[65536]{0}', space=vmem, size = 0x10000, scoped, tag = 'input window, operand 4, single buffered']
    #allocation12 [shape = 'u8[4096]{0}', space=vmem, size = 0x1000, scoped, tag = 'output window, operand 0, single buffered']
    %11 = vsyncpa [#allocation4], 0
    %12 = vsyncpa [#allocation7], 0
    %13 = vsyncpa [#allocation10], 0
    %14 = vsyncpa [#allocation5], 0
    // Predicated region
    $region2: #{tpu_custom_call.1} parent=1 // pred_check
      _
    $region3: #{tpu_custom_call.1} parent=1 // pred_check_branch
      %16 = sbr.rel (0) target = $region5
    $region4: #{tpu_custom_call.1} parent=1 // pred_region
      %s18 = ssub.s32 128, 128
      %19 = vsyncadd [#allocation4], %s18
      %s21 = sshll.u32 [#allocation3], 4
      %s22 = int_to_ptr.vmem [resolvable:$true] %s21
      %24 = dma.hbm_to_vmem [thread:$0]  %s0, 128, %s22, [#allocation4]
    $region5: #{tpu_custom_call.1} parent=1 // pred_fallthru
      _
    // Predicated region
    $region6: #{tpu_custom_call.1} parent=1 // pred_check
      _
    $region7: #{tpu_custom_call.1} parent=1 // pred_check_branch
      %26 = sbr.rel (0) target = $region9
    $region8: #{tpu_custom_call.1} parent=1 // pred_region
      %s28 = ssub.s32 128, 128
      %29 = vsyncadd [#allocation7], %s28
      %s31 = sshll.u32 [#allocation6], 4
      %s32 = int_to_ptr.vmem [resolvable:$true] %s31
      %34 = dma.hbm_to_vmem [thread:$0]  %s1, 128, %s32, [#allocation7]
    $region9: #{tpu_custom_call.1} parent=1 // pred_fallthru
      _
    // Predicated region
    $region10: #{tpu_custom_call.1} parent=1 // pred_check
      _
    $region11: #{tpu_custom_call.1} parent=1 // pred_check_branch
      %36 = sbr.rel (0) target = $region13
    $region12: #{tpu_custom_call.1} parent=1 // pred_region
      %s38 = ssub.s32 1024, 1024
      %39 = vsyncadd [#allocation7], %s38
      %s40 = sshll.u32 [#allocation8], 4
      %s41 = int_to_ptr.vmem [resolvable:$true] %s40
      %46 = dma.hbm_to_vmem [thread:$0]  %s2, 1024, %s41, [#allocation7], 128, 128, 8
    $region13: #{tpu_custom_call.1} parent=1 // pred_fallthru
      _
    // Predicated region
    $region14: #{tpu_custom_call.1} parent=1 // pred_check
      _
    $region15: #{tpu_custom_call.1} parent=1 // pred_check_branch
      %48 = sbr.rel (0) target = $region17
    $region16: #{tpu_custom_call.1} parent=1 // pred_region
      %s50 = ssub.s32 2048, 2048
      %51 = vsyncadd [#allocation10], %s50
      %s52 = sshll.u32 [#allocation9], 4
      %s53 = int_to_ptr.vmem [resolvable:$true] %s52
      %58 = dma.hbm_to_vmem [thread:$0]  %s3, 2048, %s53, [#allocation10], 128, 128, 8
    $region17: #{tpu_custom_call.1} parent=1 // pred_fallthru
      _
    // Predicated region
    $region18: #{tpu_custom_call.1} parent=1 // pred_check
      _
    $region19: #{tpu_custom_call.1} parent=1 // pred_check_branch
      %60 = sbr.rel (0) target = $region21
    $region20: #{tpu_custom_call.1} parent=1 // pred_region
      %s62 = ssub.s32 2048, 2048
      %63 = vsyncadd [#allocation10], %s62
      %s64 = sshll.u32 [#allocation11], 4
      %s65 = int_to_ptr.vmem [resolvable:$true] %s64
      %70 = dma.hbm_to_vmem [thread:$0]  %s4, 2048, %s65, [#allocation10], 128, 128, 8
    $region21: #{tpu_custom_call.1} parent=1 // pred_fallthru
      _
    // Predicated region
    $region22: #{tpu_custom_call.1} parent=1 // pred_check
      _
    $region23: #{tpu_custom_call.1} parent=1 // pred_check_branch
      %72 = sbr.rel (0) target = $region25
    $region24: #{tpu_custom_call.1} parent=1 // pred_region
      _
    $region25: #{tpu_custom_call.1} parent=1 // pred_fallthru
      _
    // Predicated region
    $region26: #{tpu_custom_call.1} parent=1 // pred_check
      _
    $region27: #{tpu_custom_call.1} parent=1 // pred_check_branch
      %74 = sbr.rel (0) target = $region29
    $region28: #{tpu_custom_call.1} parent=1 // pred_region
      %75 = dma.done [#allocation4], 128
    $region29: #{tpu_custom_call.1} parent=1 // pred_fallthru
      _
    // Predicated region
    $region30: #{tpu_custom_call.1} parent=1 // pred_check
      _
    $region31: #{tpu_custom_call.1} parent=1 // pred_check_branch
      %77 = sbr.rel (0) target = $region33
    $region32: #{tpu_custom_call.1} parent=1 // pred_region
      %78 = dma.done [#allocation7], 128
    $region33: #{tpu_custom_call.1} parent=1 // pred_fallthru
      _
    // Predicated region
    $region34: #{tpu_custom_call.1} parent=1 // pred_check
      _
    $region35: #{tpu_custom_call.1} parent=1 // pred_check_branch
      %80 = sbr.rel (0) target = $region37
    $region36: #{tpu_custom_call.1} parent=1 // pred_region
      %81 = dma.done [#allocation7], 1024
    $region37: #{tpu_custom_call.1} parent=1 // pred_fallthru
      _
    // Predicated region
    $region38: #{tpu_custom_call.1} parent=1 // pred_check
      _
    $region39: #{tpu_custom_call.1} parent=1 // pred_check_branch
      %83 = sbr.rel (0) target = $region41
    $region40: #{tpu_custom_call.1} parent=1 // pred_region
      %84 = dma.done [#allocation10], 2048
    $region41: #{tpu_custom_call.1} parent=1 // pred_fallthru
      _
    // Predicated region
    $region42: #{tpu_custom_call.1} parent=1 // pred_check
      _
    $region43: #{tpu_custom_call.1} parent=1 // pred_check_branch
      %86 = sbr.rel (0) target = $region45
    $region44: #{tpu_custom_call.1} parent=1 // pred_region
      %87 = dma.done [#allocation10], 2048
    $region45: #{tpu_custom_call.1} parent=1 // pred_fallthru
      _
    %v88 = vld [vmem:[#allocation3] sm:$0xff]
    %vm89 = vcmask 261120
    %90 = vst.msk [vmem:[#allocation2] sm:$0xff] %vm89, %v88
    %v91 = vld [vmem:[#allocation6] sm:$0xff]
    %93 = vrot.lane.b32.xlu0 %v91, 32
    %v94 = vpop.permute.xlu0 %93
    %vm96 = vcmask 523520
    %97 = vst.msk [vmem:[#allocation2] sm:$0xff] %vm96, %v94
    %v98 = vld [vmem:[#allocation2] sm:$0xff]
    %v99 = vld [vmem:[#allocation8] sm:$0xff]
    %v100 = vld [vmem:[#allocation8 + $0x8] sm:$0xff]
    %v101 = vld [vmem:[#allocation8 + $0x10] sm:$0xff]
    %v102 = vld [vmem:[#allocation8 + $0x18] sm:$0xff]
    %v103 = vld [vmem:[#allocation8 + $0x20] sm:$0xff]
    %v104 = vld [vmem:[#allocation8 + $0x28] sm:$0xff]
    %v105 = vld [vmem:[#allocation8 + $0x30] sm:$0xff]
    %v106 = vld [vmem:[#allocation8 + $0x38] sm:$0xff]
    %v107 = vld [vmem:[%s5] sm:$0x1]
    %v108 = vlaneseq
    %v109 = vshrl.u32 %v108, 7
    %v110 = vsub.s32 0, %v109
    %v111 = vrot.slane %v107, %v110
    %vm112 = vcmask 523264
    %v114 = vsel %vm112, %v98, 0
    %116 = vmatprep.subr.mxu0 0.0
    %117 = vmatpush1.msra.mxu0 %v99
    %118 = vmatprep.subr.mxu0 0.0
    %119 = vmatpush1.msra.mxu0 %v100
    %120 = vmatprep.subr.mxu0 0.0
    %121 = vmatpush1.msra.mxu0 %v101
    %122 = vmatprep.subr.mxu0 0.0
    %123 = vmatpush1.msra.mxu0 %v102
    %124 = vmatprep.subr.mxu0 0.0
    %125 = vmatpush1.msra.mxu0 %v103
    %126 = vmatprep.subr.mxu0 0.0
    %127 = vmatpush1.msra.mxu0 %v104
    %128 = vmatprep.subr.mxu0 0.0
    %129 = vmatpush1.msra.mxu0 %v105
    %130 = vmatprep.subr.mxu0 0.0
    %131 = vmatpush1.msra.mxu0 %v106
    %132 = vmatprep.subr.mxu0 0.0
    %133 = vmatpush1.msra.mxu0 0.0
    %134 = vmatprep.subr.mxu0 0.0
    %135 = vmatpush1.msra.mxu0 0.0
    %136 = vmatprep.subr.mxu0 0.0
    %137 = vmatpush1.msra.mxu0 0.0
    %138 = vmatprep.subr.mxu0 0.0
    %139 = vmatpush1.msra.mxu0 0.0
    %140 = vmatprep.subr.mxu0 0.0
    %141 = vmatpush1.msra.mxu0 0.0
    %142 = vmatprep.subr.mxu0 0.0
    %143 = vmatpush1.msra.mxu0 0.0
    %144 = vmatprep.subr.mxu0 0.0
    %145 = vmatpush1.msra.mxu0 0.0
    %146 = vmatprep.subr.mxu0 0.0
    %147 = vmatpush1.msra.mxu0 0.0
    %148 = vmatprep.subr.mxu0 0.0
    %149 = vmatpush1.msra.mxu0 0.0
    %150 = vmatprep.subr.mxu0 0.0
    %151 = vmatpush1.msra.mxu0 0.0
    %152 = vmatprep.subr.mxu0 0.0
    %153 = vmatpush1.msra.mxu0 0.0
    %154 = vmatprep.subr.mxu0 0.0
    %155 = vmatpush1.msra.mxu0 0.0
    %156 = vmatprep.subr.mxu0 0.0
    %157 = vmatpush1.msra.mxu0 0.0
    %158 = vmatprep.subr.mxu0 0.0
    %159 = vmatpush1.msra.mxu0 0.0
    %160 = vmatprep.subr.mxu0 0.0
    %161 = vmatpush1.msra.mxu0 0.0
    %162 = vmatprep.subr.mxu0 0.0
    %163 = vmatpush1.msra.mxu0 0.0
    %164 = vmatprep.subr.mxu0 0.0
    %165 = vmatpush1.msra.mxu0 0.0
    %166 = vmatprep.subr.mxu0 0.0
    %167 = vmatpush1.msra.mxu0 0.0
    %168 = vmatprep.subr.mxu0 0.0
    %169 = vmatpush1.msra.mxu0 0.0
    %170 = vmatprep.subr.mxu0 0.0
    %171 = vmatpush1.msra.mxu0 0.0
    %172 = vmatprep.subr.mxu0 0.0
    %173 = vmatpush1.msra.mxu0 0.0
    %174 = vmatprep.subr.mxu0 0.0
    %175 = vmatpush1.msra.mxu0 0.0
    %176 = vmatprep.subr.mxu0 0.0
    %177 = vmatpush1.msra.mxu0 0.0
    %178 = vmatprep.subr.mxu0 0.0
    %179 = vmatpush1.msra.mxu0 0.0
    %180 = vmatprep.mubr.f32.mxu0 0.0
    %181 = vmatmul.mubr.f32.gmra.mrb[0].mxu0 %v114
    %v182 = vpop.f32.mrb[0].mxu0
    %v183 = vadd.f32 %v111, %v182
    %v184 = vpop.f32.mrb[0].mxu0
    %185 = vdwg.mxu0
    %v186 = vtanh.pop %v183
    %v187 = vld [vmem:[#allocation9] sm:$0xff]
    %v188 = vld [vmem:[#allocation9 + $0x8] sm:$0xff]
    %v189 = vld [vmem:[#allocation9 + $0x10] sm:$0xff]
    %v190 = vld [vmem:[#allocation9 + $0x18] sm:$0xff]
    %v191 = vld [vmem:[#allocation9 + $0x20] sm:$0xff]
    %v192 = vld [vmem:[#allocation9 + $0x28] sm:$0xff]
    %v193 = vld [vmem:[#allocation9 + $0x30] sm:$0xff]
    %v194 = vld [vmem:[#allocation9 + $0x38] sm:$0xff]
    %v195 = vld [vmem:[#allocation9 + $0x40] sm:$0xff]
    %v196 = vld [vmem:[#allocation9 + $0x48] sm:$0xff]
    %v197 = vld [vmem:[#allocation9 + $0x50] sm:$0xff]
    %v198 = vld [vmem:[#allocation9 + $0x58] sm:$0xff]
    %v199 = vld [vmem:[#allocation9 + $0x60] sm:$0xff]
    %v200 = vld [vmem:[#allocation9 + $0x68] sm:$0xff]
    %v201 = vld [vmem:[#allocation9 + $0x70] sm:$0xff]
    %v202 = vld [vmem:[#allocation9 + $0x78] sm:$0xff]
    %v203 = vld [vmem:[%s5 + $0x1] sm:$0x1]
    %v204 = vlaneseq
    %v205 = vshrl.u32 %v204, 7
    %v206 = vsub.s32 0, %v205
    %v207 = vrot.slane %v203, %v206
    %208 = vmatprep.subr.mxu0 0.0
    %209 = vmatpush1.msra.mxu0 %v187
    %210 = vmatprep.subr.mxu0 0.0
    %211 = vmatpush1.msra.mxu0 %v188
    %212 = vmatprep.subr.mxu0 0.0
    %213 = vmatpush1.msra.mxu0 %v189
    %214 = vmatprep.subr.mxu0 0.0
    %215 = vmatpush1.msra.mxu0 %v190
    %216 = vmatprep.subr.mxu0 0.0
    %217 = vmatpush1.msra.mxu0 %v191
    %218 = vmatprep.subr.mxu0 0.0
    %219 = vmatpush1.msra.mxu0 %v192
    %220 = vmatprep.subr.mxu0 0.0
    %221 = vmatpush1.msra.mxu0 %v193
    %222 = vmatprep.subr.mxu0 0.0
    %223 = vmatpush1.msra.mxu0 %v194
    %224 = vmatprep.subr.mxu0 0.0
    %225 = vmatpush1.msra.mxu0 %v195
    %226 = vmatprep.subr.mxu0 0.0
    %227 = vmatpush1.msra.mxu0 %v196
    %228 = vmatprep.subr.mxu0 0.0
    %229 = vmatpush1.msra.mxu0 %v197
    %230 = vmatprep.subr.mxu0 0.0
    %231 = vmatpush1.msra.mxu0 %v198
    %232 = vmatprep.subr.mxu0 0.0
    %233 = vmatpush1.msra.mxu0 %v199
    %234 = vmatprep.subr.mxu0 0.0
    %235 = vmatpush1.msra.mxu0 %v200
    %236 = vmatprep.subr.mxu0 0.0
    %237 = vmatpush1.msra.mxu0 %v201
    %238 = vmatprep.subr.mxu0 0.0
    %239 = vmatpush1.msra.mxu0 %v202
    %240 = vmatprep.subr.mxu0 0.0
    %241 = vmatpush1.msra.mxu0 0.0
    %242 = vmatprep.subr.mxu0 0.0
    %243 = vmatpush1.msra.mxu0 0.0
    %244 = vmatprep.subr.mxu0 0.0
    %245 = vmatpush1.msra.mxu0 0.0
    %246 = vmatprep.subr.mxu0 0.0
    %247 = vmatpush1.msra.mxu0 0.0
    %248 = vmatprep.subr.mxu0 0.0
    %249 = vmatpush1.msra.mxu0 0.0
    %250 = vmatprep.subr.mxu0 0.0
    %251 = vmatpush1.msra.mxu0 0.0
    %252 = vmatprep.subr.mxu0 0.0
    %253 = vmatpush1.msra.mxu0 0.0
    %254 = vmatprep.subr.mxu0 0.0
    %255 = vmatpush1.msra.mxu0 0.0
    %256 = vmatprep.subr.mxu0 0.0
    %257 = vmatpush1.msra.mxu0 0.0
    %258 = vmatprep.subr.mxu0 0.0
    %259 = vmatpush1.msra.mxu0 0.0
    %260 = vmatprep.subr.mxu0 0.0
    %261 = vmatpush1.msra.mxu0 0.0
    %262 = vmatprep.subr.mxu0 0.0
    %263 = vmatpush1.msra.mxu0 0.0
    %264 = vmatprep.subr.mxu0 0.0
    %265 = vmatpush1.msra.mxu0 0.0
    %266 = vmatprep.subr.mxu0 0.0
    %267 = vmatpush1.msra.mxu0 0.0
    %268 = vmatprep.subr.mxu0 0.0
    %269 = vmatpush1.msra.mxu0 0.0
    %270 = vmatprep.subr.mxu0 0.0
    %271 = vmatpush1.msra.mxu0 0.0
    %272 = vmatprep.mubr.f32.mxu0 0.0
    %273 = vmatmul.mubr.f32.gmra.mrb[0].mxu0 %v186
    %v274 = vpop.f32.mrb[0].mxu0
    %v275 = vadd.f32 %v207, %v274
    %v276 = vpop.f32.mrb[0].mxu0
    %277 = vdwg.mxu0
    %v278 = vtanh.pop %v275
    %v279 = vld [vmem:[#allocation11] sm:$0xff]
    %v280 = vld [vmem:[#allocation11 + $0x8] sm:$0xff]
    %v281 = vld [vmem:[#allocation11 + $0x10] sm:$0xff]
    %v282 = vld [vmem:[#allocation11 + $0x18] sm:$0xff]
    %v283 = vld [vmem:[#allocation11 + $0x20] sm:$0xff]
    %v284 = vld [vmem:[#allocation11 + $0x28] sm:$0xff]
    %v285 = vld [vmem:[#allocation11 + $0x30] sm:$0xff]
    %v286 = vld [vmem:[#allocation11 + $0x38] sm:$0xff]
    %v287 = vld [vmem:[#allocation11 + $0x40] sm:$0xff]
    %v288 = vld [vmem:[#allocation11 + $0x48] sm:$0xff]
    %v289 = vld [vmem:[#allocation11 + $0x50] sm:$0xff]
    %v290 = vld [vmem:[#allocation11 + $0x58] sm:$0xff]
    %v291 = vld [vmem:[#allocation11 + $0x60] sm:$0xff]
    %v292 = vld [vmem:[#allocation11 + $0x68] sm:$0xff]
    %v293 = vld [vmem:[#allocation11 + $0x70] sm:$0xff]
    %v294 = vld [vmem:[#allocation11 + $0x78] sm:$0xff]
    %v295 = vld [vmem:[%s5 + $0x2] sm:$0x1]
    %v296 = vlaneseq
    %v297 = vshrl.u32 %v296, 7
    %v298 = vsub.s32 0, %v297
    %v299 = vrot.slane %v295, %v298
    %300 = vmatprep.subr.mxu0 0.0
    %301 = vmatpush1.msra.mxu0 %v279
    %302 = vmatprep.subr.mxu0 0.0
    %303 = vmatpush1.msra.mxu0 %v280
    %304 = vmatprep.subr.mxu0 0.0
    %305 = vmatpush1.msra.mxu0 %v281
    %306 = vmatprep.subr.mxu0 0.0
    %307 = vmatpush1.msra.mxu0 %v282
    %308 = vmatprep.subr.mxu0 0.0
    %309 = vmatpush1.msra.mxu0 %v283
    %310 = vmatprep.subr.mxu0 0.0
    %311 = vmatpush1.msra.mxu0 %v284
    %312 = vmatprep.subr.mxu0 0.0
    %313 = vmatpush1.msra.mxu0 %v285
    %314 = vmatprep.subr.mxu0 0.0
    %315 = vmatpush1.msra.mxu0 %v286
    %316 = vmatprep.subr.mxu0 0.0
    %317 = vmatpush1.msra.mxu0 %v287
    %318 = vmatprep.subr.mxu0 0.0
    %319 = vmatpush1.msra.mxu0 %v288
    %320 = vmatprep.subr.mxu0 0.0
    %321 = vmatpush1.msra.mxu0 %v289
    %322 = vmatprep.subr.mxu0 0.0
    %323 = vmatpush1.msra.mxu0 %v290
    %324 = vmatprep.subr.mxu0 0.0
    %325 = vmatpush1.msra.mxu0 %v291
    %326 = vmatprep.subr.mxu0 0.0
    %327 = vmatpush1.msra.mxu0 %v292
    %328 = vmatprep.subr.mxu0 0.0
    %329 = vmatpush1.msra.mxu0 %v293
    %330 = vmatprep.subr.mxu0 0.0
    %331 = vmatpush1.msra.mxu0 %v294
    %332 = vmatprep.subr.mxu0 0.0
    %333 = vmatpush1.msra.mxu0 0.0
    %334 = vmatprep.subr.mxu0 0.0
    %335 = vmatpush1.msra.mxu0 0.0
    %336 = vmatprep.subr.mxu0 0.0
    %337 = vmatpush1.msra.mxu0 0.0
    %338 = vmatprep.subr.mxu0 0.0
    %339 = vmatpush1.msra.mxu0 0.0
    %340 = vmatprep.subr.mxu0 0.0
    %341 = vmatpush1.msra.mxu0 0.0
    %342 = vmatprep.subr.mxu0 0.0
    %343 = vmatpush1.msra.mxu0 0.0
    %344 = vmatprep.subr.mxu0 0.0
    %345 = vmatpush1.msra.mxu0 0.0
    %346 = vmatprep.subr.mxu0 0.0
    %347 = vmatpush1.msra.mxu0 0.0
    %348 = vmatprep.subr.mxu0 0.0
    %349 = vmatpush1.msra.mxu0 0.0
    %350 = vmatprep.subr.mxu0 0.0
    %351 = vmatpush1.msra.mxu0 0.0
    %352 = vmatprep.subr.mxu0 0.0
    %353 = vmatpush1.msra.mxu0 0.0
    %354 = vmatprep.subr.mxu0 0.0
    %355 = vmatpush1.msra.mxu0 0.0
    %356 = vmatprep.subr.mxu0 0.0
    %357 = vmatpush1.msra.mxu0 0.0
    %358 = vmatprep.subr.mxu0 0.0
    %359 = vmatpush1.msra.mxu0 0.0
    %360 = vmatprep.subr.mxu0 0.0
    %361 = vmatpush1.msra.mxu0 0.0
    %362 = vmatprep.subr.mxu0 0.0
    %363 = vmatpush1.msra.mxu0 0.0
    %364 = vmatprep.mubr.f32.mxu0 0.0
    %365 = vmatmul.mubr.f32.gmra.mrb[0].mxu0 %v278
    %v366 = vpop.f32.mrb[0].mxu0
    %v367 = vadd.f32 %v299, %v366
    %v368 = vpop.f32.mrb[0].mxu0
    %369 = vdwg.mxu0
    %v370 = vtanh.pop %v367
    %371 = vst [vmem:[#allocation12] sm:$0xff] %v370
    // Predicated region
    $region46: #{tpu_custom_call.1} parent=1 // pred_check
      _
    $region47: #{tpu_custom_call.1} parent=1 // pred_check_branch
      %373 = sbr.rel (0) target = $region49
    $region48: #{tpu_custom_call.1} parent=1 // pred_region
      %s375 = ssub.s32 128, 128
      %376 = vsyncadd [#allocation5], %s375
      %s378 = sshll.u32 [#allocation12], 4
      %s379 = int_to_ptr.vmem [resolvable:$true] %s378
      %381 = dma.vmem_to_hbm [thread:$0]  %s379, 128, %s6, [#allocation5]
    $region49: #{tpu_custom_call.1} parent=1 // pred_fallthru
      _
    // Predicated region
    $region50: #{tpu_custom_call.1} parent=1 // pred_check
      _
    $region51: #{tpu_custom_call.1} parent=1 // pred_check_branch
      %383 = sbr.rel (0) target = $region53
    $region52: #{tpu_custom_call.1} parent=1 // pred_region
      %384 = dma.done [#allocation5], 128
    $region53: #{tpu_custom_call.1} parent=1 // pred_fallthru
      _
    %385 = vsyncpa [#allocation4], 1
    %386 = vsyncpa [#allocation7], 1
    %387 = vsyncpa [#allocation10], 1
    %388 = vsyncpa [#allocation5], 1

</llo_original>
